<compile_context>
chip_gen: v5e
topology: v5e:2x2
jax: 0.10.0
libtpu: 0.0.40
codegen_flags: <defaults>
</compile_context>

<pallas_src>
import functools

import jax
import jax.numpy as jnp
from jax.experimental import pallas as pl
from jax.experimental.pallas import tpu as pltpu

IN_FEATURES = 8
HIDDEN = 128
N_ACTIONS = 4
HEAD_OUT = 8          # narrow output: 4 actions + 1 sum col + 3 zero pad lanes
SUM_COL = N_ACTIONS   # column 4 carries the per-row sum of advantages


def _round_up(n, m):
    return ((n + m - 1) // m) * m


def _net_kernel(x_ref, w1_ref, b1_ref, w2_ref, b2_ref, wh_ref, bh_ref, out_ref):
    # Cast of x folded into the kernel (cheap on an 8-wide block); matmul
    # operands may be bf16, accumulation & elementwise math stay f32.
    x = x_ref[...].astype(w1_ref.dtype)
    # fc1 + ReLU
    h1 = jnp.dot(x, w1_ref[...], preferred_element_type=jnp.float32)
    h1 = jnp.maximum(h1 + b1_ref[...], 0.0)
    # fc2 + ReLU
    h2 = jnp.dot(h1.astype(w2_ref.dtype), w2_ref[...],
                 preferred_element_type=jnp.float32)
    h2 = jnp.maximum(h2 + b2_ref[...], 0.0)
    # Fused value + advantage head, one (HIDDEN, 8) matmul:
    #   cols 0..3 : value + advantage_j   (bias folded)
    #   col  4    : per-row sum_j advantage_j (global mean finished in wrapper)
    #   cols 5..7 : zeros
    heads = jnp.dot(h2.astype(wh_ref.dtype), wh_ref[...],
                    preferred_element_type=jnp.float32)
    out_ref[...] = (heads + bh_ref[...]).astype(out_ref.dtype)


@functools.partial(jax.jit, static_argnames=("block_b",))
def net_forward(x, kparams, *, block_b=1024):
    """Forward pass matching Net.forward(x) for x of shape (B, 8)."""
    w1, b1, w2, b2, wh, bh = kparams
    B = x.shape[0]

    # Batch tile: big enough to amortize per-grid-step overhead, capped so
    # there are >=2 grid blocks whenever possible (v7x: 2 TensorCores shard the
    # "parallel" axis), and shrunk (multiple of 8 sublanes) for tiny batches.
    bb = max(8, min(block_b, _round_up(pl.cdiv(B, 2), 8)))
    n_blocks = pl.cdiv(B, bb)
    Bp = n_blocks * bb
    x_pad = x if Bp == B else jnp.pad(x, ((0, Bp - B), (0, 0)))

    const = lambda i: (0, 0)   # weights/biases: same VMEM block every grid step
    flops = 2 * Bp * (IN_FEATURES * HIDDEN + HIDDEN * HIDDEN + HIDDEN * HEAD_OUT)
    bytes_accessed = int(
        x_pad.size * x_pad.dtype.itemsize
        + sum(int(p.size) * p.dtype.itemsize for p in kparams)
        + Bp * HEAD_OUT * 4)

    raw = pl.pallas_call(
        _net_kernel,
        out_shape=jax.ShapeDtypeStruct((Bp, HEAD_OUT), jnp.float32),
        grid=(n_blocks,),
        in_specs=[
            pl.BlockSpec((bb, IN_FEATURES), lambda i: (i, 0)),
            pl.BlockSpec((IN_FEATURES, HIDDEN), const),
            pl.BlockSpec((1, HIDDEN), const),
            pl.BlockSpec((HIDDEN, HIDDEN), const),
            pl.BlockSpec((1, HIDDEN), const),
            pl.BlockSpec((HIDDEN, HEAD_OUT), const),
            pl.BlockSpec((1, HEAD_OUT), const),
        ],
        out_specs=pl.BlockSpec((bb, HEAD_OUT), lambda i: (i, 0)),
        compiler_params=pltpu.CompilerParams(
            dimension_semantics=("parallel",)),
        cost_estimate=pl.CostEstimate(
            flops=flops, transcendentals=0, bytes_accessed=bytes_accessed),
    )(x_pad, w1, b1, w2, b2, wh, bh)

    # Slice BEFORE the column-4 sum: padded rows carry nonzero ReLU(bias)
    # activations and must not pollute the global mean.
    raw = raw[:B]
    # torch.mean(a): mean over ALL (batch, action) elements.
    mean_a = jnp.sum(raw[:, SUM_COL]) / (B * N_ACTIONS)
    return raw[:, :N_ACTIONS] - mean_a


def init_params(key):
    """nn.Linear-style init: U(-1/sqrt(fan_in), +1/sqrt(fan_in)); W stored (in,out)."""
    def linear(key, fan_in, fan_out):
        kw, kb = jax.random.split(key)
        bound = 1.0 / jnp.sqrt(float(fan_in))
        w = jax.random.uniform(kw, (fan_in, fan_out), jnp.float32, -bound, bound)
        b = jax.random.uniform(kb, (fan_out,), jnp.float32, -bound, bound)
        return w, b

    k1, k2, k3, k4 = jax.random.split(key, 4)
    w1, b1 = linear(k1, IN_FEATURES, HIDDEN)
    w2, b2 = linear(k2, HIDDEN, HIDDEN)
    wv, bv = linear(k3, HIDDEN, 1)
    wa, ba = linear(k4, HIDDEN, N_ACTIONS)
    return dict(w1=w1, b1=b1, w2=w2, b2=b2, wv=wv, bv=bv, wa=wa, ba=ba)


def make_kernel_params(p, weight_dtype=jnp.float32):
    """One-time layout plumbing (hoisted out of the kernel / per-call path).

    bf16 matmul operands are fine on all chips (v5e MXU consumes bf16 natively);
    biases stay f32 so the in-kernel elementwise path stays f32.
    """
    wh = jnp.zeros((HIDDEN, HEAD_OUT), jnp.float32)
    wh = wh.at[:, :N_ACTIONS].set(p["wa"] + p["wv"])       # v folded into each action col
    wh = wh.at[:, SUM_COL].set(jnp.sum(p["wa"], axis=1))    # per-row advantage sum
    bh = jnp.zeros((1, HEAD_OUT), jnp.float32)
    bh = bh.at[0, :N_ACTIONS].set(p["ba"] + p["bv"])
    bh = bh.at[0, SUM_COL].set(jnp.sum(p["ba"]))

    w1 = p["w1"].astype(weight_dtype)
    w2 = p["w2"].astype(weight_dtype)
    wh = wh.astype(weight_dtype)
    b1 = p["b1"].reshape(1, HIDDEN)
    b2 = p["b2"].reshape(1, HIDDEN)
    return (w1, b1, w2, b2, wh, bh)


def reference_forward(x, p):
    """Pure-JAX reference of the PyTorch forward."""
    h1 = jnp.maximum(x @ p["w1"] + p["b1"], 0.0)
    h2 = jnp.maximum(h1 @ p["w2"] + p["b2"], 0.0)
    v = h2 @ p["wv"] + p["bv"]
    a = h2 @ p["wa"] + p["ba"]
    return v + (a - jnp.mean(a))


if __name__ == "__main__":
    key = jax.random.PRNGKey(0)
    kp, kx1, kx2 = jax.random.split(key, 3)
    params = init_params(kp)

    # --- small f32 run (B=8 -> single 8-row block, no padding) ---------------
    x_small = jax.random.normal(kx1, (8, IN_FEATURES), jnp.float32)
    kparams_f32 = make_kernel_params(params, jnp.float32)
    out = jax.block_until_ready(net_forward(x_small, kparams_f32))
    ref = reference_forward(x_small, params)
    assert out.shape == (8, N_ACTIONS)
    assert jnp.allclose(out, ref, atol=1e-3, rtol=1e-3), \
        float(jnp.max(jnp.abs(out - ref)))

    # --- bf16-operand run, 2 "parallel" grid blocks (both v7x TCs active) ----
    x_big = jax.random.normal(kx2, (256, IN_FEATURES), jnp.float32)
    kparams_bf16 = make_kernel_params(params, jnp.bfloat16)
    out_bf16 = jax.block_until_ready(net_forward(x_big, kparams_bf16))
    ref_big = reference_forward(x_big, params)
    assert out_bf16.shape == (256, N_ACTIONS)
    assert jnp.allclose(out_bf16, ref_big, atol=5e-2, rtol=5e-2), \
        float(jnp.max(jnp.abs(out_bf16 - ref_big)))

    print("KERNEL_OK")
</pallas_src>

<mosaic_0001>
module attributes {stable_mosaic.version = 11 : i64} {
  func.func @_net_kernel(%arg0: i32, %arg1: memref<8x8xf32, #tpu.memory_space<vmem>>, %arg2: memref<8x128xf32, #tpu.memory_space<vmem>>, %arg3: memref<1x128xf32, #tpu.memory_space<vmem>>, %arg4: memref<128x128xf32, #tpu.memory_space<vmem>>, %arg5: memref<1x128xf32, #tpu.memory_space<vmem>>, %arg6: memref<128x8xf32, #tpu.memory_space<vmem>>, %arg7: memref<1x8xf32, #tpu.memory_space<vmem>>, %arg8: memref<8x8xf32, #tpu.memory_space<vmem>>) attributes {dimension_semantics = [#tpu.dimension_semantics<parallel>], iteration_bounds = array<i64: 1>, scalar_prefetch = 0 : i64, scratch_operands = 0 : i64, tpu.core_type = #tpu.core_type<tc>, window_params = [{transform_indices = @transform_0, window_bounds = array<i64: 8, 8>}, {pipeline_mode = #tpu.pipeline_mode<synchronous>, transform_indices = @transform_1, window_bounds = array<i64: 8, 128>}, {pipeline_mode = #tpu.pipeline_mode<synchronous>, transform_indices = @transform_2, window_bounds = array<i64: 1, 128>}, {pipeline_mode = #tpu.pipeline_mode<synchronous>, transform_indices = @transform_3, window_bounds = array<i64: 128, 128>}, {pipeline_mode = #tpu.pipeline_mode<synchronous>, transform_indices = @transform_4, window_bounds = array<i64: 1, 128>}, {pipeline_mode = #tpu.pipeline_mode<synchronous>, transform_indices = @transform_5, window_bounds = array<i64: 128, 8>}, {pipeline_mode = #tpu.pipeline_mode<synchronous>, transform_indices = @transform_6, window_bounds = array<i64: 1, 8>}, {transform_indices = @transform_7, window_bounds = array<i64: 8, 8>}]} {
    %c0 = arith.constant 0 : index
    %c0_0 = arith.constant 0 : index
    %0 = vector.load %arg1[%c0, %c0_0] : memref<8x8xf32, #tpu.memory_space<vmem>>, vector<8x8xf32>
    %c0_1 = arith.constant 0 : index
    %c0_2 = arith.constant 0 : index
    %1 = vector.load %arg2[%c0_1, %c0_2] : memref<8x128xf32, #tpu.memory_space<vmem>>, vector<8x128xf32>
    %cst = arith.constant dense<0.000000e+00> : vector<8x128xf32>
    %2 = tpu.matmul %0, %1, %cst {dimension_numbers = #tpu.dot_dimension_numbers<[1], [0], [0], [1], [0, 0, 1, 1], [], []>} : vector<8x8xf32>, vector<8x128xf32>, vector<8x128xf32> -> vector<8x128xf32>
    %c0_3 = arith.constant 0 : index
    %c0_4 = arith.constant 0 : index
    %3 = vector.load %arg3[%c0_3, %c0_4] : memref<1x128xf32, #tpu.memory_space<vmem>>, vector<1x128xf32>
    %4 = vector.broadcast %3 : vector<1x128xf32> to vector<8x128xf32>
    %5 = arith.addf %2, %4 : vector<8x128xf32>
    %cst_5 = arith.constant 0.000000e+00 : f32
    %6 = vector.broadcast %cst_5 : f32 to vector<8x128xf32>
    %7 = arith.maximumf %5, %6 : vector<8x128xf32>
    %c0_6 = arith.constant 0 : index
    %c0_7 = arith.constant 0 : index
    %8 = vector.load %arg4[%c0_6, %c0_7] : memref<128x128xf32, #tpu.memory_space<vmem>>, vector<128x128xf32>
    %cst_8 = arith.constant dense<0.000000e+00> : vector<8x128xf32>
    %9 = tpu.matmul %7, %8, %cst_8 {dimension_numbers = #tpu.dot_dimension_numbers<[1], [0], [0], [1], [0, 0, 1, 1], [], []>} : vector<8x128xf32>, vector<128x128xf32>, vector<8x128xf32> -> vector<8x128xf32>
    %c0_9 = arith.constant 0 : index
    %c0_10 = arith.constant 0 : index
    %10 = vector.load %arg5[%c0_9, %c0_10] : memref<1x128xf32, #tpu.memory_space<vmem>>, vector<1x128xf32>
    %11 = vector.broadcast %10 : vector<1x128xf32> to vector<8x128xf32>
    %12 = arith.addf %9, %11 : vector<8x128xf32>
    %cst_11 = arith.constant 0.000000e+00 : f32
    %13 = vector.broadcast %cst_11 : f32 to vector<8x128xf32>
    %14 = arith.maximumf %12, %13 : vector<8x128xf32>
    %c0_12 = arith.constant 0 : index
    %c0_13 = arith.constant 0 : index
    %15 = vector.load %arg6[%c0_12, %c0_13] : memref<128x8xf32, #tpu.memory_space<vmem>>, vector<128x8xf32>
    %cst_14 = arith.constant dense<0.000000e+00> : vector<8x8xf32>
    %16 = tpu.matmul %14, %15, %cst_14 {dimension_numbers = #tpu.dot_dimension_numbers<[1], [0], [0], [1], [0, 0, 1, 1], [], []>} : vector<8x128xf32>, vector<128x8xf32>, vector<8x8xf32> -> vector<8x8xf32>
    %c0_15 = arith.constant 0 : index
    %c0_16 = arith.constant 0 : index
    %17 = vector.load %arg7[%c0_15, %c0_16] : memref<1x8xf32, #tpu.memory_space<vmem>>, vector<1x8xf32>
    %18 = vector.broadcast %17 : vector<1x8xf32> to vector<8x8xf32>
    %19 = arith.addf %16, %18 : vector<8x8xf32>
    %c0_17 = arith.constant 0 : index
    %c0_18 = arith.constant 0 : index
    %20 = vector.load %arg8[%c0_17, %c0_18] : memref<8x8xf32, #tpu.memory_space<vmem>>, vector<8x8xf32>
    tpu.vector_store %arg8[%c0_17, %c0_18], %19 {strides = array<i32>} : memref<8x8xf32, #tpu.memory_space<vmem>>, vector<8x8xf32>,
    return
  }
  func.func @transform_0(%arg0: i32) -> (i32, i32) {
    %c0_i32 = arith.constant 0 : i32
    %c0_i32_0 = arith.constant 0 : i32
    return %arg0, %c0_i32 : i32, i32
  }
  func.func @transform_1(%arg0: i32) -> (i32, i32) {
    %c0_i32 = arith.constant 0 : i32
    %c0_i32_0 = arith.constant 0 : i32
    %c0_i32_1 = arith.constant 0 : i32
    return %c0_i32, %c0_i32_0 : i32, i32
  }
  func.func @transform_2(%arg0: i32) -> (i32, i32) {
    %c0_i32 = arith.constant 0 : i32
    %c0_i32_0 = arith.constant 0 : i32
    %c0_i32_1 = arith.constant 0 : i32
    return %c0_i32, %c0_i32_0 : i32, i32
  }
  func.func @transform_3(%arg0: i32) -> (i32, i32) {
    %c0_i32 = arith.constant 0 : i32
    %c0_i32_0 = arith.constant 0 : i32
    %c0_i32_1 = arith.constant 0 : i32
    return %c0_i32, %c0_i32_0 : i32, i32
  }
  func.func @transform_4(%arg0: i32) -> (i32, i32) {
    %c0_i32 = arith.constant 0 : i32
    %c0_i32_0 = arith.constant 0 : i32
    %c0_i32_1 = arith.constant 0 : i32
    return %c0_i32, %c0_i32_0 : i32, i32
  }
  func.func @transform_5(%arg0: i32) -> (i32, i32) {
    %c0_i32 = arith.constant 0 : i32
    %c0_i32_0 = arith.constant 0 : i32
    %c0_i32_1 = arith.constant 0 : i32
    return %c0_i32, %c0_i32_0 : i32, i32
  }
  func.func @transform_6(%arg0: i32) -> (i32, i32) {
    %c0_i32 = arith.constant 0 : i32
    %c0_i32_0 = arith.constant 0 : i32
    %c0_i32_1 = arith.constant 0 : i32
    return %c0_i32, %c0_i32_0 : i32, i32
  }
  func.func @transform_7(%arg0: i32) -> (i32, i32) {
    %c0_i32 = arith.constant 0 : i32
    %c0_i32_0 = arith.constant 0 : i32
    return %arg0, %c0_i32 : i32, i32
  }
}

</mosaic_0001>

<llo_original>
// kernel: net_forward.1
$region0: #{net_forward.1}
  #allocation0 [shape = 'u32[]', space=smem, size = 0x4, offset = 0x4, fixed_abs, tag = 'smem constant byte address 0x4 - core index']
  #allocation1 [shape = 'u32[72,128]{1,0:T(1,128)}', space=vmem, size = 0x9000, scoped, tag = 'internal scratch']
  %s0 = inlined_call_operand.vmem [shape: f32[8,8], index: 0, kind: input, shape index: {}]
  %s1 = inlined_call_operand.hbm [shape: f32[8,128], index: 1, kind: input, shape index: {}]
  %s2 = inlined_call_operand.vmem [shape: f32[1,128], index: 2, kind: input, shape index: {}]
  %s3 = inlined_call_operand.vmem [shape: f32[128,128], index: 3, kind: input, shape index: {}]
  %s4 = inlined_call_operand.vmem [shape: f32[1,128], index: 4, kind: input, shape index: {}]
  %s5 = inlined_call_operand.vmem [shape: f32[128,8], index: 5, kind: input, shape index: {}]
  %s6 = inlined_call_operand.vmem [shape: f32[1,8], index: 6, kind: input, shape index: {}]
  %s7 = inlined_call_operand.vmem [shape: f32[8,8], index: 7, kind: output, shape index: {}]
  %s8 = sld [smem:[#allocation0]]
  $region42: #{net_forward.1} parent=0
    _
  %s10 = ssub.s32 1, %s8
  %s11 = scalar_select 0, %s10, %s8
  $region1: #{net_forward.1} parent=0
    #allocation2 [shape = 'u8[4096]{0}', space=vmem, size = 0x1000, scoped, tag = 'input window, operand 1, single buffered']
    #allocation3 [shape = 's32[1]{0}', space=sflag, size = 0x4, scoped, tag = 'scoped memory for net_forward.1']
    %12 = vsyncpa [#allocation3], 0
    // Predicated region
    $region2: #{net_forward.1} parent=1 // pred_check
      _
    $region3: #{net_forward.1} parent=1 // pred_check_branch
      %14 = sbr.rel (0) target = $region5
    $region4: #{net_forward.1} parent=1 // pred_region
      _
    $region5: #{net_forward.1} parent=1 // pred_fallthru
      _
    // Predicated region
    $region6: #{net_forward.1} parent=1 // pred_check
      _
    $region7: #{net_forward.1} parent=1 // pred_check_branch
      %16 = sbr.rel (0) target = $region9
    $region8: #{net_forward.1} parent=1 // pred_region
      %18 = vsyncadd [#allocation3], 0
      %s20 = sshll.u32 %s1, 4
      %s21 = int_to_ptr.hbm [resolvable:$true] %s20
      %s22 = sshll.u32 [#allocation2], 4
      %s23 = int_to_ptr.vmem [resolvable:$true] %s22
      %25 = dma.hbm_to_vmem [thread:$0]  %s21, 128, %s23, [#allocation3]
    $region9: #{net_forward.1} parent=1 // pred_fallthru
      _
    // Predicated region
    $region10: #{net_forward.1} parent=1 // pred_check
      _
    $region11: #{net_forward.1} parent=1 // pred_check_branch
      %27 = sbr.rel (0) target = $region13
    $region12: #{net_forward.1} parent=1 // pred_region
      _
    $region13: #{net_forward.1} parent=1 // pred_fallthru
      _
    // Predicated region
    $region14: #{net_forward.1} parent=1 // pred_check
      _
    $region15: #{net_forward.1} parent=1 // pred_check_branch
      %29 = sbr.rel (0) target = $region17
    $region16: #{net_forward.1} parent=1 // pred_region
      _
    $region17: #{net_forward.1} parent=1 // pred_fallthru
      _
    // Predicated region
    $region18: #{net_forward.1} parent=1 // pred_check
      _
    $region19: #{net_forward.1} parent=1 // pred_check_branch
      %31 = sbr.rel (0) target = $region21
    $region20: #{net_forward.1} parent=1 // pred_region
      _
    $region21: #{net_forward.1} parent=1 // pred_fallthru
      _
    // Predicated region
    $region22: #{net_forward.1} parent=1 // pred_check
      _
    $region23: #{net_forward.1} parent=1 // pred_check_branch
      %33 = sbr.rel (0) target = $region25
    $region24: #{net_forward.1} parent=1 // pred_region
      _
    $region25: #{net_forward.1} parent=1 // pred_fallthru
      _
    // Predicated region
    $region26: #{net_forward.1} parent=1 // pred_check
      _
    $region27: #{net_forward.1} parent=1 // pred_check_branch
      %35 = sbr.rel (0) target = $region29
    $region28: #{net_forward.1} parent=1 // pred_region
      _
    $region29: #{net_forward.1} parent=1 // pred_fallthru
      _
    // Predicated region
    $region30: #{net_forward.1} parent=1 // pred_check
      _
    $region31: #{net_forward.1} parent=1 // pred_check_branch
      %37 = sbr.rel (0) target = $region33
    $region32: #{net_forward.1} parent=1 // pred_region
      %39 = dma.done [#allocation3], 128
    $region33: #{net_forward.1} parent=1 // pred_fallthru
      _
    %v40 = vld [vmem:[%s0] sm:$0xff]
    %v41 = vld [vmem:[#allocation2] sm:$0xff]
    %v42 = vld [vmem:[%s2] sm:$0x1]
    %v44 = vperm.slane %v42, 0
    %vm46 = vcmask 64512
    %v48 = vsel %vm46, %v40, 0
    %50 = vmatpush.msra.mxu0 0.0
    %51 = vmatpush.msra.mxu0 0.0
    %52 = vmatpush.msra.mxu0 0.0
    %53 = vmatpush.msra.mxu0 0.0
    %54 = vmatpush.msra.mxu0 0.0
    %55 = vmatpush.msra.mxu0 0.0
    %56 = vmatpush.msra.mxu0 0.0
    %57 = vmatpush.msra.mxu0 0.0
    %58 = vmatpush.msra.mxu0 0.0
    %59 = vmatpush.msra.mxu0 0.0
    %60 = vmatpush.msra.mxu0 0.0
    %61 = vmatpush.msra.mxu0 0.0
    %62 = vmatpush.msra.mxu0 0.0
    %63 = vmatpush.msra.mxu0 0.0
    %64 = vmatpush.msra.mxu0 0.0
    %65 = vmatpush.msra.mxu0 %v41
    %66 = vmatmul.f32.gmra.mxu0 %v48
    %v67 = vpop.f32.mrf.mxu0
    %v68 = vadd.f32 %v44, %v67
    %69 = vdwg.mxu0
    %v70 = vmax.f32 %v68, 0.0
    %v71 = vld [vmem:[%s3] sm:$0xff]
    %v72 = vld [vmem:[%s3 + $0x8] sm:$0xff]
    %v73 = vld [vmem:[%s3 + $0x10] sm:$0xff]
    %v74 = vld [vmem:[%s3 + $0x18] sm:$0xff]
    %v75 = vld [vmem:[%s3 + $0x20] sm:$0xff]
    %v76 = vld [vmem:[%s3 + $0x28] sm:$0xff]
    %v77 = vld [vmem:[%s3 + $0x30] sm:$0xff]
    %v78 = vld [vmem:[%s3 + $0x38] sm:$0xff]
    %v79 = vld [vmem:[%s3 + $0x40] sm:$0xff]
    %v80 = vld [vmem:[%s3 + $0x48] sm:$0xff]
    %v81 = vld [vmem:[%s3 + $0x50] sm:$0xff]
    %v82 = vld [vmem:[%s3 + $0x58] sm:$0xff]
    %v83 = vld [vmem:[%s3 + $0x60] sm:$0xff]
    %v84 = vld [vmem:[%s3 + $0x68] sm:$0xff]
    %v85 = vld [vmem:[%s3 + $0x70] sm:$0xff]
    %v86 = vld [vmem:[%s3 + $0x78] sm:$0xff]
    %v87 = vld [vmem:[%s4] sm:$0x1]
    %v89 = vperm.slane %v87, 0
    %91 = vmatpush.msra.mxu0 %v86
    %92 = vmatpush.msra.mxu0 %v85
    %93 = vmatpush.msra.mxu0 %v84
    %94 = vmatpush.msra.mxu0 %v83
    %95 = vmatpush.msra.mxu0 %v82
    %96 = vmatpush.msra.mxu0 %v81
    %97 = vmatpush.msra.mxu0 %v80
    %98 = vmatpush.msra.mxu0 %v79
    %99 = vmatpush.msra.mxu0 %v78
    %100 = vmatpush.msra.mxu0 %v77
    %101 = vmatpush.msra.mxu0 %v76
    %102 = vmatpush.msra.mxu0 %v75
    %103 = vmatpush.msra.mxu0 %v74
    %104 = vmatpush.msra.mxu0 %v73
    %105 = vmatpush.msra.mxu0 %v72
    %106 = vmatpush.msra.mxu0 %v71
    %107 = vmatmul.f32.gmra.mxu0 %v70
    %v108 = vpop.f32.mrf.mxu0
    %v109 = vadd.f32 %v89, %v108
    %110 = vdwg.mxu0
    %v111 = vmax.f32 %v109, 0.0
    %v112 = vld [vmem:[%s5] sm:$0xff]
    %v113 = vld [vmem:[%s5 + $0x8] sm:$0xff]
    %v114 = vld [vmem:[%s5 + $0x10] sm:$0xff]
    %v115 = vld [vmem:[%s5 + $0x18] sm:$0xff]
    %v116 = vld [vmem:[%s5 + $0x20] sm:$0xff]
    %v117 = vld [vmem:[%s5 + $0x28] sm:$0xff]
    %v118 = vld [vmem:[%s5 + $0x30] sm:$0xff]
    %v119 = vld [vmem:[%s5 + $0x38] sm:$0xff]
    %v120 = vld [vmem:[%s5 + $0x40] sm:$0xff]
    %v121 = vld [vmem:[%s5 + $0x48] sm:$0xff]
    %v122 = vld [vmem:[%s5 + $0x50] sm:$0xff]
    %v123 = vld [vmem:[%s5 + $0x58] sm:$0xff]
    %v124 = vld [vmem:[%s5 + $0x60] sm:$0xff]
    %v125 = vld [vmem:[%s5 + $0x68] sm:$0xff]
    %v126 = vld [vmem:[%s5 + $0x70] sm:$0xff]
    %v127 = vld [vmem:[%s5 + $0x78] sm:$0xff]
    %v128 = vld [vmem:[%s6] sm:$0x1]
    %v130 = vperm.slane %v128, 0
    %132 = vmatpush.msra.mxu0 %v127
    %133 = vmatpush.msra.mxu0 %v126
    %134 = vmatpush.msra.mxu0 %v125
    %135 = vmatpush.msra.mxu0 %v124
    %136 = vmatpush.msra.mxu0 %v123
    %137 = vmatpush.msra.mxu0 %v122
    %138 = vmatpush.msra.mxu0 %v121
    %139 = vmatpush.msra.mxu0 %v120
    %140 = vmatpush.msra.mxu0 %v119
    %141 = vmatpush.msra.mxu0 %v118
    %142 = vmatpush.msra.mxu0 %v117
    %143 = vmatpush.msra.mxu0 %v116
    %144 = vmatpush.msra.mxu0 %v115
    %145 = vmatpush.msra.mxu0 %v114
    %146 = vmatpush.msra.mxu0 %v113
    %147 = vmatpush.msra.mxu0 %v112
    %148 = vmatmul.f32.gmra.mxu0 %v111
    %v149 = vpop.f32.mrf.mxu0
    %v150 = vadd.f32 %v130, %v149
    %151 = vdwg.mxu0
    %152 = vst.msk [vmem:[%s7] sm:$0xff] %vm46, %v150
    // Predicated region
    $region34: #{net_forward.1} parent=1 // pred_check
      _
    $region35: #{net_forward.1} parent=1 // pred_check_branch
      %154 = sbr.rel (0) target = $region37
    $region36: #{net_forward.1} parent=1 // pred_region
      _
    $region37: #{net_forward.1} parent=1 // pred_fallthru
      _
    // Predicated region
    $region38: #{net_forward.1} parent=1 // pred_check
      _
    $region39: #{net_forward.1} parent=1 // pred_check_branch
      %156 = sbr.rel (0) target = $region41
    $region40: #{net_forward.1} parent=1 // pred_region
      _
    $region41: #{net_forward.1} parent=1 // pred_fallthru
      _
    %157 = vsyncpa [#allocation3], 1

</llo_original>
